<compile_context>
chip_gen: v6e
topology: v6e:2x2x1
jax: 0.10.0
libtpu: 0.0.40
codegen_flags: <defaults>
</compile_context>

<pallas_src>
import jax
import jax.numpy as jnp
import numpy as np
from jax.experimental import pallas as pl
from jax.experimental.pallas import tpu as pltpu

# ---- small, module-consistent hyper-parameters -------------------------------
B = 8             # batch
RES = 32          # opt.resSize
ATT = 16          # opt.attSize
NDH = 64          # opt.ndh
NUM_CLASSES = 10  # opt.num_classes (label range; unused by forward)


# ---- math helpers (jnp only, usable inside & outside the kernel) -------------
def _lrelu(x, slope):
    return jnp.where(x >= 0, x, slope * x)


# ---- the Pallas kernel --------------------------------------------------------
def disc_d1_kernel(x_ref, att_ref, w1x_ref, w1a_ref, b1_ref, w2_ref, b2_ref,
                   out_ref):
    # hidden = LeakyReLU(0.2)( cat(x, att) @ W1 + b1 )
    #        = LeakyReLU(0.2)( x @ W1[:RES] + att @ W1[RES:] + b1 )
    h = (jnp.dot(x_ref[...], w1x_ref[...], preferred_element_type=jnp.float32)
         + jnp.dot(att_ref[...], w1a_ref[...], preferred_element_type=jnp.float32)
         + b1_ref[...])
    hidden = _lrelu(h, 0.2)

    # authen_output = fc2(hidden)
    out_ref[...] = (
        jnp.dot(hidden, w2_ref[...], preferred_element_type=jnp.float32)
        + b2_ref[...])


# ---- wrapper ------------------------------------------------------------------
def _full_spec(shape):
    nd = len(shape)
    return pl.BlockSpec(shape, lambda _nd=nd: (0,) * _nd)


@jax.jit
def discriminator_d1_label(x, att, label, params):
    del label  # not used by the original forward()
    inputs = (
        x, att,
        params["w1x"], params["w1a"], params["b1"],
        params["w2"], params["b2"],
    )
    out_shape = jax.ShapeDtypeStruct((x.shape[0], 1), jnp.float32)
    return pl.pallas_call(
        disc_d1_kernel,
        out_shape=out_shape,
        in_specs=[_full_spec(t.shape) for t in inputs],
        out_specs=_full_spec((x.shape[0], 1)),
        compiler_params=pltpu.CompilerParams(vmem_limit_bytes=16 << 20),
    )(*inputs)


# ---- deterministic parameter init (mirrors weights_init) ----------------------
def init_params(key):
    k1, k2 = jax.random.split(key, 2)
    # weights_init: Linear weight ~ N(0, 0.02), bias = 0
    w1 = 0.02 * jax.random.normal(k1, (RES + ATT, NDH), jnp.float32)  # fc1^T
    b1 = jnp.zeros((1, NDH), jnp.float32)
    w2 = 0.02 * jax.random.normal(k2, (NDH, 1), jnp.float32)          # fc2^T
    b2 = jnp.zeros((1, 1), jnp.float32)
    return dict(
        w1x=w1[:RES],       # rows multiplying x
        w1a=w1[RES:],       # rows multiplying att
        b1=b1, w2=w2, b2=b2,
    )


# ---- pure-JAX reference (same math, used for the correctness check) -----------
def reference(x, att, params):
    h = jnp.concatenate([x, att], axis=1)
    w1 = jnp.concatenate([params["w1x"], params["w1a"]], axis=0)
    hidden = _lrelu(h @ w1 + params["b1"], 0.2)
    return hidden @ params["w2"] + params["b2"]


if __name__ == "__main__":
    key = jax.random.PRNGKey(0)
    kp, kx, ka, kl = jax.random.split(key, 4)
    params = init_params(kp)
    x = jax.random.normal(kx, (B, RES), jnp.float32)
    att = jax.random.normal(ka, (B, ATT), jnp.float32)
    label = jax.random.randint(kl, (B,), 0, NUM_CLASSES)

    out = discriminator_d1_label(x, att, label, params)
    out = jax.block_until_ready(out)

    ref = reference(x, att, params)
    np.testing.assert_allclose(np.asarray(out), np.asarray(ref),
                               rtol=1e-5, atol=1e-5)
    print("KERNEL_OK")
</pallas_src>

<mosaic_0001>
module attributes {stable_mosaic.version = 11 : i64} {
  func.func @disc_d1_kernel(%arg0: memref<8x32xf32, #tpu.memory_space<vmem>>, %arg1: memref<8x16xf32, #tpu.memory_space<vmem>>, %arg2: memref<32x64xf32, #tpu.memory_space<vmem>>, %arg3: memref<16x64xf32, #tpu.memory_space<vmem>>, %arg4: memref<1x64xf32, #tpu.memory_space<vmem>>, %arg5: memref<64x1xf32, #tpu.memory_space<vmem>>, %arg6: memref<1x1xf32, #tpu.memory_space<vmem>>, %arg7: memref<8x1xf32, #tpu.memory_space<vmem>>) attributes {dimension_semantics = [], scalar_prefetch = 0 : i64, scratch_operands = 0 : i64, tpu.core_type = #tpu.core_type<tc>} {
    %c0 = arith.constant 0 : index
    %c0_0 = arith.constant 0 : index
    %0 = vector.load %arg0[%c0, %c0_0] : memref<8x32xf32, #tpu.memory_space<vmem>>, vector<8x32xf32>
    %c0_1 = arith.constant 0 : index
    %c0_2 = arith.constant 0 : index
    %1 = vector.load %arg2[%c0_1, %c0_2] : memref<32x64xf32, #tpu.memory_space<vmem>>, vector<32x64xf32>
    %cst = arith.constant dense<0.000000e+00> : vector<8x64xf32>
    %2 = tpu.matmul %0, %1, %cst {dimension_numbers = #tpu.dot_dimension_numbers<[1], [0], [0], [1], [0, 0, 1, 1], [], []>} : vector<8x32xf32>, vector<32x64xf32>, vector<8x64xf32> -> vector<8x64xf32>
    %c0_3 = arith.constant 0 : index
    %c0_4 = arith.constant 0 : index
    %3 = vector.load %arg1[%c0_3, %c0_4] : memref<8x16xf32, #tpu.memory_space<vmem>>, vector<8x16xf32>
    %c0_5 = arith.constant 0 : index
    %c0_6 = arith.constant 0 : index
    %4 = vector.load %arg3[%c0_5, %c0_6] : memref<16x64xf32, #tpu.memory_space<vmem>>, vector<16x64xf32>
    %cst_7 = arith.constant dense<0.000000e+00> : vector<8x64xf32>
    %5 = tpu.matmul %3, %4, %cst_7 {dimension_numbers = #tpu.dot_dimension_numbers<[1], [0], [0], [1], [0, 0, 1, 1], [], []>} : vector<8x16xf32>, vector<16x64xf32>, vector<8x64xf32> -> vector<8x64xf32>
    %6 = arith.addf %2, %5 : vector<8x64xf32>
    %c0_8 = arith.constant 0 : index
    %c0_9 = arith.constant 0 : index
    %7 = vector.load %arg4[%c0_8, %c0_9] : memref<1x64xf32, #tpu.memory_space<vmem>>, vector<1x64xf32>
    %8 = vector.broadcast %7 : vector<1x64xf32> to vector<8x64xf32>
    %9 = arith.addf %6, %8 : vector<8x64xf32>
    %cst_10 = arith.constant 0.000000e+00 : f32
    %10 = vector.broadcast %cst_10 : f32 to vector<8x64xf32>
    %11 = arith.cmpf oge, %9, %10 : vector<8x64xf32>
    %cst_11 = arith.constant 2.000000e-01 : f32
    %12 = vector.broadcast %cst_11 : f32 to vector<8x64xf32>
    %13 = arith.mulf %12, %9 : vector<8x64xf32>
    %14 = arith.select %11, %9, %13 : vector<8x64xi1>, vector<8x64xf32>
    %c0_12 = arith.constant 0 : index
    %c0_13 = arith.constant 0 : index
    %15 = vector.load %arg5[%c0_12, %c0_13] : memref<64x1xf32, #tpu.memory_space<vmem>>, vector<64x1xf32>
    %cst_14 = arith.constant dense<0.000000e+00> : vector<8x1xf32>
    %16 = tpu.matmul %14, %15, %cst_14 {dimension_numbers = #tpu.dot_dimension_numbers<[1], [0], [0], [1], [0, 0, 1, 1], [], []>} : vector<8x64xf32>, vector<64x1xf32>, vector<8x1xf32> -> vector<8x1xf32>
    %c0_15 = arith.constant 0 : index
    %c0_16 = arith.constant 0 : index
    %17 = vector.load %arg6[%c0_15, %c0_16] : memref<1x1xf32, #tpu.memory_space<vmem>>, vector<1x1xf32>
    %18 = vector.broadcast %17 : vector<1x1xf32> to vector<8x1xf32>
    %19 = arith.addf %16, %18 : vector<8x1xf32>
    %c0_17 = arith.constant 0 : index
    %c0_18 = arith.constant 0 : index
    %20 = vector.load %arg7[%c0_17, %c0_18] : memref<8x1xf32, #tpu.memory_space<vmem>>, vector<8x1xf32>
    tpu.vector_store %arg7[%c0_17, %c0_18], %19 {strides = array<i32>} : memref<8x1xf32, #tpu.memory_space<vmem>>, vector<8x1xf32>,
    return
  }
}

</mosaic_0001>

<llo_original>
// kernel: discriminator_d1_label.1
$region0: #{discriminator_d1_label.1}
  #allocation0 [shape = 'u32[]', space=smem, size = 0x4, offset = 0x4, fixed_abs, tag = 'smem constant byte address 0x4 - core index']
  #allocation1 [shape = 'u32[144,128]{1,0:T(1,128)}', space=vmem, size = 0x12000, scoped, tag = 'internal scratch']
  #allocation2 [shape = 'f32[1,1]{1,0:T(1,128)S(1)}', space=vmem, size = 0x200, scoped, tag = 'scoped memory for discriminator_d1_label.1']
  %s0 = inlined_call_operand.vmem [shape: f32[8,32], index: 0, kind: input, shape index: {}]
  %s1 = inlined_call_operand.vmem [shape: f32[8,16], index: 1, kind: input, shape index: {}]
  %s2 = inlined_call_operand.vmem [shape: f32[32,64], index: 2, kind: input, shape index: {}]
  %s3 = inlined_call_operand.vmem [shape: f32[16,64], index: 3, kind: input, shape index: {}]
  %s4 = inlined_call_operand.vmem [shape: f32[1,64], index: 4, kind: input, shape index: {}]
  %s5 = inlined_call_operand.vmem [shape: f32[64,1], index: 5, kind: input, shape index: {}]
  %s6 = inlined_call_operand.<no memory space> [shape: f32[1,1], index: 6, kind: input, shape index: {}]
  %s7 = inlined_call_operand.vmem [shape: f32[8,1], index: 7, kind: output, shape index: {}]
  %s8 = sld [smem:[#allocation0]]
  $region38: #{discriminator_d1_label.1} parent=0
    _
  %s10 = ssub.s32 1, %s8
  %s11 = scalar_select 0, %s10, %s8
  %v12 = vstv %s6
  %13 = vst [vmem:[#allocation2] sm:$0x1] %v12
  // Predicated region
  $region2: #{discriminator_d1_label.1} parent=0 // pred_check
    _
  $region3: #{discriminator_d1_label.1} parent=0 // pred_check_branch
    %15 = sbr.rel (0) target = $region5
  $region4: #{discriminator_d1_label.1} parent=0 // pred_region
    _
  $region5: #{discriminator_d1_label.1} parent=0 // pred_fallthru
    _
  // Predicated region
  $region6: #{discriminator_d1_label.1} parent=0 // pred_check
    _
  $region7: #{discriminator_d1_label.1} parent=0 // pred_check_branch
    %17 = sbr.rel (0) target = $region9
  $region8: #{discriminator_d1_label.1} parent=0 // pred_region
    _
  $region9: #{discriminator_d1_label.1} parent=0 // pred_fallthru
    _
  // Predicated region
  $region10: #{discriminator_d1_label.1} parent=0 // pred_check
    _
  $region11: #{discriminator_d1_label.1} parent=0 // pred_check_branch
    %19 = sbr.rel (0) target = $region13
  $region12: #{discriminator_d1_label.1} parent=0 // pred_region
    _
  $region13: #{discriminator_d1_label.1} parent=0 // pred_fallthru
    _
  // Predicated region
  $region14: #{discriminator_d1_label.1} parent=0 // pred_check
    _
  $region15: #{discriminator_d1_label.1} parent=0 // pred_check_branch
    %21 = sbr.rel (0) target = $region17
  $region16: #{discriminator_d1_label.1} parent=0 // pred_region
    _
  $region17: #{discriminator_d1_label.1} parent=0 // pred_fallthru
    _
  // Predicated region
  $region18: #{discriminator_d1_label.1} parent=0 // pred_check
    _
  $region19: #{discriminator_d1_label.1} parent=0 // pred_check_branch
    %23 = sbr.rel (0) target = $region21
  $region20: #{discriminator_d1_label.1} parent=0 // pred_region
    _
  $region21: #{discriminator_d1_label.1} parent=0 // pred_fallthru
    _
  // Predicated region
  $region22: #{discriminator_d1_label.1} parent=0 // pred_check
    _
  $region23: #{discriminator_d1_label.1} parent=0 // pred_check_branch
    %25 = sbr.rel (0) target = $region25
  $region24: #{discriminator_d1_label.1} parent=0 // pred_region
    _
  $region25: #{discriminator_d1_label.1} parent=0 // pred_fallthru
    _
  // Predicated region
  $region26: #{discriminator_d1_label.1} parent=0 // pred_check
    _
  $region27: #{discriminator_d1_label.1} parent=0 // pred_check_branch
    %27 = sbr.rel (0) target = $region29
  $region28: #{discriminator_d1_label.1} parent=0 // pred_region
    _
  $region29: #{discriminator_d1_label.1} parent=0 // pred_fallthru
    _
  %v28 = vld [vmem:[%s0] sm:$0xff]
  %v29 = vld [vmem:[%s2] sm:$0xff]
  %v30 = vld [vmem:[%s2 + $0x8] sm:$0xff]
  %v31 = vld [vmem:[%s2 + $0x10] sm:$0xff]
  %v32 = vld [vmem:[%s2 + $0x18] sm:$0xff]
  %v33 = vld [vmem:[%s1] sm:$0xff]
  %v34 = vld [vmem:[%s3] sm:$0xff]
  %v35 = vld [vmem:[%s3 + $0x8] sm:$0xff]
  %vm36 = vcmask 130048
  %v38 = vsel %vm36, %v33, 0
  %40 = vmatprep.subr.mxu0 0.0
  %41 = vmatpush1.msra.mxu0 0.0
  %42 = vmatprep.subr.mxu0 0.0
  %43 = vmatpush1.msra.mxu0 0.0
  %44 = vmatprep.subr.mxu0 0.0
  %45 = vmatpush1.msra.mxu0 0.0
  %46 = vmatprep.subr.mxu0 0.0
  %47 = vmatpush1.msra.mxu0 0.0
  %48 = vmatprep.subr.mxu0 0.0
  %49 = vmatpush1.msra.mxu0 0.0
  %50 = vmatprep.subr.mxu0 0.0
  %51 = vmatpush1.msra.mxu0 0.0
  %52 = vmatprep.subr.mxu0 0.0
  %53 = vmatpush1.msra.mxu0 0.0
  %54 = vmatprep.subr.mxu0 0.0
  %55 = vmatpush1.msra.mxu0 0.0
  %56 = vmatprep.subr.mxu0 0.0
  %57 = vmatpush1.msra.mxu0 0.0
  %58 = vmatprep.subr.mxu0 0.0
  %59 = vmatpush1.msra.mxu0 0.0
  %60 = vmatprep.subr.mxu0 0.0
  %61 = vmatpush1.msra.mxu0 0.0
  %62 = vmatprep.subr.mxu0 0.0
  %63 = vmatpush1.msra.mxu0 0.0
  %64 = vmatprep.subr.mxu0 0.0
  %65 = vmatpush1.msra.mxu0 0.0
  %66 = vmatprep.subr.mxu0 0.0
  %67 = vmatpush1.msra.mxu0 0.0
  %68 = vmatprep.subr.mxu0 0.0
  %69 = vmatpush1.msra.mxu0 %v35
  %70 = vmatprep.subr.mxu0 0.0
  %71 = vmatpush1.msra.mxu0 %v34
  %72 = vmatprep.subr.mxu0 0.0
  %73 = vmatpush2.msra.mxu0 0.0
  %74 = vmatprep.subr.mxu0 0.0
  %75 = vmatpush2.msra.mxu0 0.0
  %76 = vmatprep.subr.mxu0 0.0
  %77 = vmatpush2.msra.mxu0 0.0
  %78 = vmatprep.subr.mxu0 0.0
  %79 = vmatpush2.msra.mxu0 0.0
  %80 = vmatprep.subr.mxu0 0.0
  %81 = vmatpush2.msra.mxu0 0.0
  %82 = vmatprep.subr.mxu0 0.0
  %83 = vmatpush2.msra.mxu0 0.0
  %84 = vmatprep.subr.mxu0 0.0
  %85 = vmatpush2.msra.mxu0 0.0
  %86 = vmatprep.subr.mxu0 0.0
  %87 = vmatpush2.msra.mxu0 0.0
  %88 = vmatprep.subr.mxu0 0.0
  %89 = vmatpush2.msra.mxu0 0.0
  %90 = vmatprep.subr.mxu0 0.0
  %91 = vmatpush2.msra.mxu0 0.0
  %92 = vmatprep.subr.mxu0 0.0
  %93 = vmatpush2.msra.mxu0 0.0
  %94 = vmatprep.subr.mxu0 0.0
  %95 = vmatpush2.msra.mxu0 0.0
  %96 = vmatprep.subr.mxu0 0.0
  %97 = vmatpush2.msra.mxu0 0.0
  %98 = vmatprep.subr.mxu0 0.0
  %99 = vmatpush2.msra.mxu0 0.0
  %100 = vmatprep.subr.mxu0 0.0
  %101 = vmatpush2.msra.mxu0 0.0
  %102 = vmatprep.subr.mxu0 0.0
  %103 = vmatpush2.msra.mxu0 0.0
  %104 = vmatprep.mubr.f32.mxu0 0.0
  %105 = vmatmul.mubr.f32.gmra.mxu0 %v38
  %v106 = vpop.f32.mrf.mxu0
  %v107 = vadd.f32 0.0, %v106
  %v108 = vpop.f32.mrf.mxu0
  %109 = vdwg.mxu0
  %vm110 = vcmask 261120
  %v112 = vsel %vm110, %v28, 0
  %114 = vmatprep.subr.mxu0 0.0
  %115 = vmatpush1.msra.mxu0 0.0
  %116 = vmatprep.subr.mxu0 0.0
  %117 = vmatpush1.msra.mxu0 0.0
  %118 = vmatprep.subr.mxu0 0.0
  %119 = vmatpush1.msra.mxu0 0.0
  %120 = vmatprep.subr.mxu0 0.0
  %121 = vmatpush1.msra.mxu0 0.0
  %122 = vmatprep.subr.mxu0 0.0
  %123 = vmatpush1.msra.mxu0 0.0
  %124 = vmatprep.subr.mxu0 0.0
  %125 = vmatpush1.msra.mxu0 0.0
  %126 = vmatprep.subr.mxu0 0.0
  %127 = vmatpush1.msra.mxu0 0.0
  %128 = vmatprep.subr.mxu0 0.0
  %129 = vmatpush1.msra.mxu0 0.0
  %130 = vmatprep.subr.mxu0 0.0
  %131 = vmatpush1.msra.mxu0 0.0
  %132 = vmatprep.subr.mxu0 0.0
  %133 = vmatpush1.msra.mxu0 0.0
  %134 = vmatprep.subr.mxu0 0.0
  %135 = vmatpush1.msra.mxu0 0.0
  %136 = vmatprep.subr.mxu0 0.0
  %137 = vmatpush1.msra.mxu0 0.0
  %138 = vmatprep.subr.mxu0 0.0
  %139 = vmatpush1.msra.mxu0 %v32
  %140 = vmatprep.subr.mxu0 0.0
  %141 = vmatpush1.msra.mxu0 %v31
  %142 = vmatprep.subr.mxu0 0.0
  %143 = vmatpush1.msra.mxu0 %v30
  %144 = vmatprep.subr.mxu0 0.0
  %145 = vmatpush1.msra.mxu0 %v29
  %146 = vmatprep.subr.mxu0 0.0
  %147 = vmatpush2.msra.mxu0 0.0
  %148 = vmatprep.subr.mxu0 0.0
  %149 = vmatpush2.msra.mxu0 0.0
  %150 = vmatprep.subr.mxu0 0.0
  %151 = vmatpush2.msra.mxu0 0.0
  %152 = vmatprep.subr.mxu0 0.0
  %153 = vmatpush2.msra.mxu0 0.0
  %154 = vmatprep.subr.mxu0 0.0
  %155 = vmatpush2.msra.mxu0 0.0
  %156 = vmatprep.subr.mxu0 0.0
  %157 = vmatpush2.msra.mxu0 0.0
  %158 = vmatprep.subr.mxu0 0.0
  %159 = vmatpush2.msra.mxu0 0.0
  %160 = vmatprep.subr.mxu0 0.0
  %161 = vmatpush2.msra.mxu0 0.0
  %162 = vmatprep.subr.mxu0 0.0
  %163 = vmatpush2.msra.mxu0 0.0
  %164 = vmatprep.subr.mxu0 0.0
  %165 = vmatpush2.msra.mxu0 0.0
  %166 = vmatprep.subr.mxu0 0.0
  %167 = vmatpush2.msra.mxu0 0.0
  %168 = vmatprep.subr.mxu0 0.0
  %169 = vmatpush2.msra.mxu0 0.0
  %170 = vmatprep.subr.mxu0 0.0
  %171 = vmatpush2.msra.mxu0 0.0
  %172 = vmatprep.subr.mxu0 0.0
  %173 = vmatpush2.msra.mxu0 0.0
  %174 = vmatprep.subr.mxu0 0.0
  %175 = vmatpush2.msra.mxu0 0.0
  %176 = vmatprep.subr.mxu0 0.0
  %177 = vmatpush2.msra.mxu0 0.0
  %178 = vmatprep.mubr.f32.mxu0 0.0
  %179 = vmatmul.mubr.f32.gmra.mxu0 %v112
  %v180 = vpop.f32.mrf.mxu0
  %v181 = vadd.f32 %v107, %v180
  %v182 = vpop.f32.mrf.mxu0
  %183 = vdwg.mxu0
  %v184 = vld [vmem:[%s4] sm:$0x1]
  %v186 = vlaneseq
  %v187 = vshrl.u32 %v186, 7
  %v188 = vsub.s32 0, %v187
  %v189 = vrot.slane %v184, %v188
  %v191 = vadd.f32 %v181, %v189
  %vm192 = vcmp.ge.f32.partialorder %v191, 0.0
  %v193 = vmul.f32 %v191, 0.2
  %v194 = vsel %vm192, %v191, %v193
  %v195 = vld [vmem:[%s5] sm:$0xff]
  %v196 = vld [vmem:[%s5 + $0x8] sm:$0xff]
  %v197 = vld [vmem:[%s5 + $0x10] sm:$0xff]
  %v198 = vld [vmem:[%s5 + $0x18] sm:$0xff]
  %v199 = vld [vmem:[%s5 + $0x20] sm:$0xff]
  %v200 = vld [vmem:[%s5 + $0x28] sm:$0xff]
  %v201 = vld [vmem:[%s5 + $0x30] sm:$0xff]
  %v202 = vld [vmem:[%s5 + $0x38] sm:$0xff]
  %v203 = vld [vmem:[#allocation2] sm:$0x1]
  %v205 = vlaneseq
  %v206 = vshrl.u32 %v205, 7
  %v207 = vsub.s32 0, %v206
  %v208 = vrot.slane %v203, %v207
  %vm210 = vcmask 523264
  %v212 = vsel %vm210, %v194, 0
  %214 = vmatprep.subr.mxu0 0.0
  %215 = vmatpush1.msra.mxu0 0.0
  %216 = vmatprep.subr.mxu0 0.0
  %217 = vmatpush1.msra.mxu0 0.0
  %218 = vmatprep.subr.mxu0 0.0
  %219 = vmatpush1.msra.mxu0 0.0
  %220 = vmatprep.subr.mxu0 0.0
  %221 = vmatpush1.msra.mxu0 0.0
  %222 = vmatprep.subr.mxu0 0.0
  %223 = vmatpush1.msra.mxu0 0.0
  %224 = vmatprep.subr.mxu0 0.0
  %225 = vmatpush1.msra.mxu0 0.0
  %226 = vmatprep.subr.mxu0 0.0
  %227 = vmatpush1.msra.mxu0 0.0
  %228 = vmatprep.subr.mxu0 0.0
  %229 = vmatpush1.msra.mxu0 0.0
  %230 = vmatprep.subr.mxu0 0.0
  %231 = vmatpush1.msra.mxu0 %v202
  %232 = vmatprep.subr.mxu0 0.0
  %233 = vmatpush1.msra.mxu0 %v201
  %234 = vmatprep.subr.mxu0 0.0
  %235 = vmatpush1.msra.mxu0 %v200
  %236 = vmatprep.subr.mxu0 0.0
  %237 = vmatpush1.msra.mxu0 %v199
  %238 = vmatprep.subr.mxu0 0.0
  %239 = vmatpush1.msra.mxu0 %v198
  %240 = vmatprep.subr.mxu0 0.0
  %241 = vmatpush1.msra.mxu0 %v197
  %242 = vmatprep.subr.mxu0 0.0
  %243 = vmatpush1.msra.mxu0 %v196
  %244 = vmatprep.subr.mxu0 0.0
  %245 = vmatpush1.msra.mxu0 %v195
  %246 = vmatprep.subr.mxu0 0.0
  %247 = vmatpush2.msra.mxu0 0.0
  %248 = vmatprep.subr.mxu0 0.0
  %249 = vmatpush2.msra.mxu0 0.0
  %250 = vmatprep.subr.mxu0 0.0
  %251 = vmatpush2.msra.mxu0 0.0
  %252 = vmatprep.subr.mxu0 0.0
  %253 = vmatpush2.msra.mxu0 0.0
  %254 = vmatprep.subr.mxu0 0.0
  %255 = vmatpush2.msra.mxu0 0.0
  %256 = vmatprep.subr.mxu0 0.0
  %257 = vmatpush2.msra.mxu0 0.0
  %258 = vmatprep.subr.mxu0 0.0
  %259 = vmatpush2.msra.mxu0 0.0
  %260 = vmatprep.subr.mxu0 0.0
  %261 = vmatpush2.msra.mxu0 0.0
  %262 = vmatprep.subr.mxu0 0.0
  %263 = vmatpush2.msra.mxu0 0.0
  %264 = vmatprep.subr.mxu0 0.0
  %265 = vmatpush2.msra.mxu0 0.0
  %266 = vmatprep.subr.mxu0 0.0
  %267 = vmatpush2.msra.mxu0 0.0
  %268 = vmatprep.subr.mxu0 0.0
  %269 = vmatpush2.msra.mxu0 0.0
  %270 = vmatprep.subr.mxu0 0.0
  %271 = vmatpush2.msra.mxu0 0.0
  %272 = vmatprep.subr.mxu0 0.0
  %273 = vmatpush2.msra.mxu0 0.0
  %274 = vmatprep.subr.mxu0 0.0
  %275 = vmatpush2.msra.mxu0 0.0
  %276 = vmatprep.subr.mxu0 0.0
  %277 = vmatpush2.msra.mxu0 0.0
  %278 = vmatprep.mubr.f32.mxu0 0.0
  %279 = vmatmul.mubr.f32.gmra.mxu0 %v212
  %v280 = vpop.f32.mrf.mxu0
  %v281 = vadd.f32 %v208, %v280
  %v282 = vpop.f32.mrf.mxu0
  %283 = vdwg.mxu0
  %vm284 = vcmask 7168
  %285 = vst.msk [vmem:[%s7] sm:$0xff] %vm284, %v281
  // Predicated region
  $region30: #{discriminator_d1_label.1} parent=0 // pred_check
    _
  $region31: #{discriminator_d1_label.1} parent=0 // pred_check_branch
    %287 = sbr.rel (0) target = $region33
  $region32: #{discriminator_d1_label.1} parent=0 // pred_region
    _
  $region33: #{discriminator_d1_label.1} parent=0 // pred_fallthru
    _
  // Predicated region
  $region34: #{discriminator_d1_label.1} parent=0 // pred_check
    _
  $region35: #{discriminator_d1_label.1} parent=0 // pred_check_branch
    %289 = sbr.rel (0) target = $region37
  $region36: #{discriminator_d1_label.1} parent=0 // pred_region
    _
  $region37: #{discriminator_d1_label.1} parent=0 // pred_fallthru
    _

</llo_original>
